<compile_context>
chip_gen: v7x
topology: tpu7x:2x2x1
jax: 0.10.0
libtpu: 0.0.40
codegen_flags: <defaults>
</compile_context>

<pallas_src>
import functools

import jax
import jax.numpy as jnp
from jax import lax
from jax.experimental import pallas as pl
from jax.experimental.pallas import tpu as pltpu


def _frame_embed_kernel(p_ref, w_ref, b_ref, o_ref):
    # One MXU matmul over the concatenated K = 36*pt*ph*pw, f32 accumulate,
    # f32 bias add, cast to the caller's output dtype.
    acc = jnp.dot(p_ref[...], w_ref[...], preferred_element_type=jnp.float32)
    o_ref[...] = (acc + b_ref[...]).astype(o_ref.dtype)


def _round_up(a, b):
    return (a + b - 1) // b * b


def _sublane_quantum(dtype):
    # 8 sublanes for 4-byte dtypes, 16 for 2-byte, 32 for 1-byte.
    return max(8, 32 // jnp.dtype(dtype).itemsize)


def _vmem_budget_bytes():
    # ~half of physical VMEM: 64 MiB on v5e/v6e (128 MiB), 32 MiB on v7x (64 MiB).
    try:
        cap = int(pltpu.get_tpu_info().vmem_capacity_bytes)
    except Exception:
        cap = 64 * 1024 * 1024
    return max(32 * 1024 * 1024, min(cap // 2, 96 * 1024 * 1024))


def _extract_patches(x, patch_size):
    """x: (B, C, T, H, W) -> (B*T'*H'*W', pt*ph*pw*C).

    Per-patch feature order is (pt, ph, pw, C) -- channel-minor -- so the XLA
    patchify transpose writes C(=36)-element contiguous runs instead of
    pw(=2)-element runs.  The fused weight matrix uses the same ordering.
    """
    # TODO(synk): fuse this patchify relayout into the kernel (needs
    # lane-strided / shuffled loads for the pw axis) to drop the intermediate
    # HBM patch slab entirely.
    B, C, T, H, W = x.shape
    pt, ph, pw = patch_size
    Tp, Hp, Wp = T // pt, H // ph, W // pw
    x = x.reshape(B, C, Tp, pt, Hp, ph, Wp, pw)
    x = x.transpose(0, 2, 4, 6, 3, 5, 7, 1)        # (B, T', H', W', pt, ph, pw, C)
    return x.reshape(B * Tp * Hp * Wp, pt * ph * pw * C), (B, Tp, Hp, Wp)


def frame_embedder_forward(x, w_orig, b_orig, w_new, b_new, patch_size,
                           tile_m=1024, tile_n=None,
                           compute_dtype=jnp.bfloat16, out_dtype=None,
                           ncdhw_output=False, vmem_budget_bytes=None):
    """Active-path FrameEmbedder.forward.

    x      : (B, 36, T, H, W)
    w_orig : (inner_dim, 16, pt, ph, pw), b_orig: (inner_dim,)
    w_new  : (inner_dim, 20, pt, ph, pw), b_new : (inner_dim,)

    Returns (B, T', H', W', inner_dim) channels-last tokens by default (the
    layout the downstream transformer flattens to); set ncdhw_output=True for
    the original module's (B, inner_dim, T', H', W') layout.

    compute_dtype: dtype fed to the MXU (patch slab + weights); bf16 default.
      Accumulation and bias stay f32.
    out_dtype: kernel output dtype; defaults to compute_dtype.  This
      intentionally deviates from the module's `.to(orig_dtype)` when x is
      f32 -- pass out_dtype=x.dtype / compute_dtype=x.dtype for exact parity.
    """
    pt, ph, pw = patch_size
    if out_dtype is None:
        out_dtype = compute_dtype
    N = w_orig.shape[0]
    C = w_orig.shape[1] + w_new.shape[1]
    K = C * pt * ph * pw

    # conv16(x[:, :16]) + conv20(x[:, 16:])  ==  conv36(x) with the weights
    # concatenated along the input-channel axis and the biases summed.
    w_cat = jnp.concatenate([w_orig, w_new], axis=1)           # (N, 36, pt, ph, pw)
    # (pt, ph, pw, C) feature order -- must match _extract_patches.
    w2d = w_cat.transpose(0, 2, 3, 4, 1).reshape(N, K).T.astype(compute_dtype)
    bias = (b_orig.astype(jnp.float32)
            + b_new.astype(jnp.float32)).reshape(1, N)         # f32 fused bias

    # Single patchify pass over all 36 channels; cast first so the XLA
    # transpose moves compute_dtype-sized bytes.
    p, (B, Tp, Hp, Wp) = _extract_patches(x.astype(compute_dtype), patch_size)
    M = p.shape[0]

    # --- N tiling: keep weights + bias resident (tn = N) unless asked not to.
    if tile_n is None or N <= tile_n:
        tn = N
    else:
        tn = max(128, (tile_n // 128) * 128)

    # --- M tiling: sublane-quantum rounding + per-chip VMEM budget.  No input
    # padding and no output slice: grid = cdiv, out_shape is exact and Pallas
    # masks the ragged edge blocks (garbage rows never reach HBM).
    quantum = max(_sublane_quantum(compute_dtype), _sublane_quantum(out_dtype))
    budget = vmem_budget_bytes or _vmem_budget_bytes()
    in_b = jnp.dtype(compute_dtype).itemsize
    out_b = jnp.dtype(out_dtype).itemsize
    k_lanes = _round_up(K, 128)          # the (tm, 144) LHS tile occupies 256 lanes
    tn_lanes = _round_up(tn, 128)
    fixed = 2 * (_round_up(K, quantum) * tn_lanes * in_b + 8 * tn_lanes * 4)
    per_row = 2 * (k_lanes * in_b + tn_lanes * out_b)    # double-buffered LHS + out
    avail = max(budget - fixed, per_row)
    tm_cap = max(quantum, avail // per_row // quantum * quantum)
    tm = min(_round_up(tile_m, quantum), _round_up(M, quantum), tm_cap)

    grid = (pl.cdiv(M, tm), pl.cdiv(N, tn))

    out2d = pl.pallas_call(
        _frame_embed_kernel,
        out_shape=jax.ShapeDtypeStruct((M, N), out_dtype),
        grid_spec=pltpu.PrefetchScalarGridSpec(
            num_scalar_prefetch=0,
            grid=grid,
            in_specs=[
                pl.BlockSpec((tm, K), lambda i, j: (i, 0)),   # patch slab
                pl.BlockSpec((K, tn), lambda i, j: (0, j)),   # fused weights
                pl.BlockSpec((1, tn), lambda i, j: (0, j)),   # fused bias (f32)
            ],
            out_specs=pl.BlockSpec((tm, tn), lambda i, j: (i, j)),
        ),
        compiler_params=pltpu.CompilerParams(
            dimension_semantics=("parallel", "parallel"),
            vmem_limit_bytes=int(budget)),
    )(p, w2d, bias)

    out = out2d.reshape(B, Tp, Hp, Wp, N)     # lane-dense token layout (no copy)
    if ncdhw_output:
        # Original module contract (B, inner_dim, T', H', W').  This transpose
        # re-reads/re-writes the largest tensor -- avoid it in production by
        # consuming the channels-last token layout directly.
        out = out.transpose(0, 4, 1, 2, 3)
    return out


def _reference_conv3d(x, w, b, patch_size):
    # NCDHW conv with kernel == stride, for correctness check only.
    out = lax.conv_general_dilated(
        x, w, window_strides=patch_size, padding="VALID",
        dimension_numbers=("NCDHW", "OIDHW", "NCDHW"))
    return out + b.reshape(1, -1, 1, 1, 1)


if __name__ == "__main__":
    key = jax.random.PRNGKey(0)

    # Small shapes consistent with the module: 36 input channels (16 for the
    # orig Conv3d + 20 for the adapter), patch_size=(1,2,2) as in
    # WanTransformer3DModel, inner_dim = 32.
    B, T, H, W = 2, 4, 16, 16
    C_ORIG, C_NEW = 16, 20
    INNER_DIM = 32
    PATCH = (1, 2, 2)
    pt, ph, pw = PATCH
    Tp, Hp, Wp = T // pt, H // ph, W // pw

    k1, k2, k3, k4, k5 = jax.random.split(key, 5)
    x = jax.random.normal(k1, (B, C_ORIG + C_NEW, T, H, W), dtype=jnp.float32)
    w_orig = jax.random.normal(k2, (INNER_DIM, C_ORIG, pt, ph, pw),
                               dtype=jnp.float32) * 0.05
    b_orig = jax.random.normal(k3, (INNER_DIM,), dtype=jnp.float32) * 0.05
    w_new = jax.random.normal(k4, (INNER_DIM, C_NEW, pt, ph, pw),
                              dtype=jnp.float32) * 0.05
    b_new = jax.random.normal(k5, (INNER_DIM,), dtype=jnp.float32) * 0.05

    # Pure-JAX reference: conv(x[:, :16]) + conv(x[:, 16:])  (NCDHW).
    ref = (_reference_conv3d(x[:, :C_ORIG], w_orig, b_orig, PATCH)
           + _reference_conv3d(x[:, C_ORIG:], w_new, b_new, PATCH))
    ref = jax.block_until_ready(ref)
    ref_tokens = ref.transpose(0, 2, 3, 4, 1)          # (B, T', H', W', N)

    # 1) Exact f32 path, default channels-last token output.
    fwd_f32 = jax.jit(functools.partial(
        frame_embedder_forward, patch_size=PATCH,
        compute_dtype=jnp.float32, out_dtype=jnp.float32))
    out_f32 = jax.block_until_ready(fwd_f32(x, w_orig, b_orig, w_new, b_new))
    assert out_f32.shape == (B, Tp, Hp, Wp, INNER_DIM), out_f32.shape
    assert jnp.allclose(out_f32, ref_tokens, atol=1e-4, rtol=1e-4), \
        float(jnp.max(jnp.abs(out_f32 - ref_tokens)))

    # 2) Default bf16 compute + bf16 output, ragged M tiling (tile_m=192 does
    #    not divide M=512), NCDHW output for module-layout parity.
    fwd_bf16 = jax.jit(functools.partial(
        frame_embedder_forward, patch_size=PATCH, tile_m=192,
        ncdhw_output=True))
    out_bf16 = jax.block_until_ready(fwd_bf16(x, w_orig, b_orig, w_new, b_new))
    assert out_bf16.shape == ref.shape, out_bf16.shape
    assert out_bf16.dtype == jnp.bfloat16
    assert jnp.allclose(out_bf16.astype(jnp.float32), ref,
                        atol=1e-1, rtol=1e-1), \
        float(jnp.max(jnp.abs(out_bf16.astype(jnp.float32) - ref)))

    print("KERNEL_OK")
</pallas_src>

<mosaic_0001>
module attributes {stable_mosaic.version = 11 : i64} {
  func.func @_frame_embed_kernel(%arg0: i32, %arg1: i32, %arg2: memref<512x144xf32, #tpu.memory_space<vmem>>, %arg3: memref<144x32xf32, #tpu.memory_space<vmem>>, %arg4: memref<1x32xf32, #tpu.memory_space<vmem>>, %arg5: memref<512x32xf32, #tpu.memory_space<vmem>>) attributes {dimension_semantics = [#tpu.dimension_semantics<parallel>, #tpu.dimension_semantics<parallel>], iteration_bounds = array<i64: 1, 1>, scalar_prefetch = 0 : i64, scratch_operands = 0 : i64, tpu.core_type = #tpu.core_type<tc>, window_params = [{transform_indices = @transform_0, window_bounds = array<i64: 512, 144>}, {transform_indices = @transform_1, window_bounds = array<i64: 144, 32>}, {transform_indices = @transform_2, window_bounds = array<i64: 1, 32>}, {transform_indices = @transform_3, window_bounds = array<i64: 512, 32>}]} {
    %c0 = arith.constant 0 : index
    %c0_0 = arith.constant 0 : index
    %0 = vector.load %arg2[%c0, %c0_0] : memref<512x144xf32, #tpu.memory_space<vmem>>, vector<512x144xf32>
    %c0_1 = arith.constant 0 : index
    %c0_2 = arith.constant 0 : index
    %1 = vector.load %arg3[%c0_1, %c0_2] : memref<144x32xf32, #tpu.memory_space<vmem>>, vector<144x32xf32>
    %cst = arith.constant dense<0.000000e+00> : vector<512x32xf32>
    %2 = tpu.matmul %0, %1, %cst {dimension_numbers = #tpu.dot_dimension_numbers<[1], [0], [0], [1], [0, 0, 1, 1], [], []>} : vector<512x144xf32>, vector<144x32xf32>, vector<512x32xf32> -> vector<512x32xf32>
    %c0_3 = arith.constant 0 : index
    %c0_4 = arith.constant 0 : index
    %3 = vector.load %arg4[%c0_3, %c0_4] : memref<1x32xf32, #tpu.memory_space<vmem>>, vector<1x32xf32>
    %4 = vector.broadcast %3 : vector<1x32xf32> to vector<512x32xf32>
    %5 = arith.addf %2, %4 : vector<512x32xf32>
    %c0_5 = arith.constant 0 : index
    %c0_6 = arith.constant 0 : index
    %6 = vector.load %arg5[%c0_5, %c0_6] : memref<512x32xf32, #tpu.memory_space<vmem>>, vector<512x32xf32>
    tpu.vector_store %arg5[%c0_5, %c0_6], %5 {strides = array<i32>} : memref<512x32xf32, #tpu.memory_space<vmem>>, vector<512x32xf32>,
    return
  }
  func.func @transform_0(%arg0: i32, %arg1: i32) -> (i32, i32) {
    %c0_i32 = arith.constant 0 : i32
    %c0_i32_0 = arith.constant 0 : i32
    return %arg0, %c0_i32 : i32, i32
  }
  func.func @transform_1(%arg0: i32, %arg1: i32) -> (i32, i32) {
    %c0_i32 = arith.constant 0 : i32
    %c0_i32_0 = arith.constant 0 : i32
    return %c0_i32, %arg1 : i32, i32
  }
  func.func @transform_2(%arg0: i32, %arg1: i32) -> (i32, i32) {
    %c0_i32 = arith.constant 0 : i32
    %c0_i32_0 = arith.constant 0 : i32
    return %c0_i32, %arg1 : i32, i32
  }
  func.func @transform_3(%arg0: i32, %arg1: i32) -> (i32, i32) {
    %c0_i32 = arith.constant 0 : i32
    return %arg0, %arg1 : i32, i32
  }
}

</mosaic_0001>

<llo_original>
// kernel: frame_embedder_forward.1
$region0: #{frame_embedder_forward.1}
  #allocation0 [shape = 'u32[]', space=smem, size = 0x4, offset = 0x4, fixed_abs, tag = 'smem constant byte address 0x4 - core index']
  #allocation1 [shape = 'u32[144,128]{1,0:T(1,128)}', space=vmem, size = 0x12000, scoped, tag = 'internal scratch']
  %s0 = inlined_call_operand.vmem [shape: f32[512,144], index: 0, kind: input, shape index: {}]
  %s1 = inlined_call_operand.vmem [shape: f32[144,32], index: 1, kind: input, shape index: {}]
  %s2 = inlined_call_operand.vmem [shape: f32[1,32], index: 2, kind: input, shape index: {}]
  %s3 = inlined_call_operand.hbm [shape: f32[512,32], index: 3, kind: output, shape index: {}]
  %s4 = sld [smem:[#allocation0]]
  $region22: #{frame_embedder_forward.1} parent=0
    _
  %s6 = ssub.s32 1, %s4
  %s7 = scalar_select 0, %s6, %s4
  $region1: #{frame_embedder_forward.1} parent=0
    #allocation2 [shape = 'u8[262144]{0}', space=vmem, size = 0x40000, scoped, tag = 'output window, operand 0, single buffered']
    #allocation3 [shape = 's32[1]{0}', space=sflag, size = 0x4, scoped, tag = 'scoped memory for frame_embedder_forward.1']
    %8 = vsyncpa [#allocation3], 0
    // Predicated region
    $region2: #{frame_embedder_forward.1} parent=1 // pred_check
      _
    $region3: #{frame_embedder_forward.1} parent=1 // pred_check_branch
      %10 = sbr.rel (0) target = $region5
    $region4: #{frame_embedder_forward.1} parent=1 // pred_region
      _
    $region5: #{frame_embedder_forward.1} parent=1 // pred_fallthru
      _
    // Predicated region
    $region6: #{frame_embedder_forward.1} parent=1 // pred_check
      _
    $region7: #{frame_embedder_forward.1} parent=1 // pred_check_branch
      %12 = sbr.rel (0) target = $region9
    $region8: #{frame_embedder_forward.1} parent=1 // pred_region
      _
    $region9: #{frame_embedder_forward.1} parent=1 // pred_fallthru
      _
    // Predicated region
    $region10: #{frame_embedder_forward.1} parent=1 // pred_check
      _
    $region11: #{frame_embedder_forward.1} parent=1 // pred_check_branch
      %14 = sbr.rel (0) target = $region13
    $region12: #{frame_embedder_forward.1} parent=1 // pred_region
      _
    $region13: #{frame_embedder_forward.1} parent=1 // pred_fallthru
      _
    %v15 = vld [vmem:[%s0] sm:$0xff]
    %v16 = vld [vmem:[%s0 + $0x8] sm:$0xff]
    %v17 = vld [vmem:[%s0 + $0x10] sm:$0xff]
    %v18 = vld [vmem:[%s0 + $0x18] sm:$0xff]
    %v19 = vld [vmem:[%s0 + $0x20] sm:$0xff]
    %v20 = vld [vmem:[%s0 + $0x28] sm:$0xff]
    %v21 = vld [vmem:[%s0 + $0x30] sm:$0xff]
    %v22 = vld [vmem:[%s0 + $0x38] sm:$0xff]
    %v23 = vld [vmem:[%s0 + $0x40] sm:$0xff]
    %v24 = vld [vmem:[%s0 + $0x48] sm:$0xff]
    %v25 = vld [vmem:[%s0 + $0x50] sm:$0xff]
    %v26 = vld [vmem:[%s0 + $0x58] sm:$0xff]
    %v27 = vld [vmem:[%s0 + $0x60] sm:$0xff]
    %v28 = vld [vmem:[%s0 + $0x68] sm:$0xff]
    %v29 = vld [vmem:[%s0 + $0x70] sm:$0xff]
    %v30 = vld [vmem:[%s0 + $0x78] sm:$0xff]
    %v31 = vld [vmem:[%s0 + $0x80] sm:$0xff]
    %v32 = vld [vmem:[%s0 + $0x88] sm:$0xff]
    %v33 = vld [vmem:[%s0 + $0x90] sm:$0xff]
    %v34 = vld [vmem:[%s0 + $0x98] sm:$0xff]
    %v35 = vld [vmem:[%s0 + $0xa0] sm:$0xff]
    %v36 = vld [vmem:[%s0 + $0xa8] sm:$0xff]
    %v37 = vld [vmem:[%s0 + $0xb0] sm:$0xff]
    %v38 = vld [vmem:[%s0 + $0xb8] sm:$0xff]
    %v39 = vld [vmem:[%s0 + $0xc0] sm:$0xff]
    %v40 = vld [vmem:[%s0 + $0xc8] sm:$0xff]
    %v41 = vld [vmem:[%s0 + $0xd0] sm:$0xff]
    %v42 = vld [vmem:[%s0 + $0xd8] sm:$0xff]
    %v43 = vld [vmem:[%s0 + $0xe0] sm:$0xff]
    %v44 = vld [vmem:[%s0 + $0xe8] sm:$0xff]
    %v45 = vld [vmem:[%s0 + $0xf0] sm:$0xff]
    %v46 = vld [vmem:[%s0 + $0xf8] sm:$0xff]
    %v47 = vld [vmem:[%s0 + $0x100] sm:$0xff]
    %v48 = vld [vmem:[%s0 + $0x108] sm:$0xff]
    %v49 = vld [vmem:[%s0 + $0x110] sm:$0xff]
    %v50 = vld [vmem:[%s0 + $0x118] sm:$0xff]
    %v51 = vld [vmem:[%s0 + $0x120] sm:$0xff]
    %v52 = vld [vmem:[%s0 + $0x128] sm:$0xff]
    %v53 = vld [vmem:[%s0 + $0x130] sm:$0xff]
    %v54 = vld [vmem:[%s0 + $0x138] sm:$0xff]
    %v55 = vld [vmem:[%s0 + $0x140] sm:$0xff]
    %v56 = vld [vmem:[%s0 + $0x148] sm:$0xff]
    %v57 = vld [vmem:[%s0 + $0x150] sm:$0xff]
    %v58 = vld [vmem:[%s0 + $0x158] sm:$0xff]
    %v59 = vld [vmem:[%s0 + $0x160] sm:$0xff]
    %v60 = vld [vmem:[%s0 + $0x168] sm:$0xff]
    %v61 = vld [vmem:[%s0 + $0x170] sm:$0xff]
    %v62 = vld [vmem:[%s0 + $0x178] sm:$0xff]
    %v63 = vld [vmem:[%s0 + $0x180] sm:$0xff]
    %v64 = vld [vmem:[%s0 + $0x188] sm:$0xff]
    %v65 = vld [vmem:[%s0 + $0x190] sm:$0xff]
    %v66 = vld [vmem:[%s0 + $0x198] sm:$0xff]
    %v67 = vld [vmem:[%s0 + $0x1a0] sm:$0xff]
    %v68 = vld [vmem:[%s0 + $0x1a8] sm:$0xff]
    %v69 = vld [vmem:[%s0 + $0x1b0] sm:$0xff]
    %v70 = vld [vmem:[%s0 + $0x1b8] sm:$0xff]
    %v71 = vld [vmem:[%s0 + $0x1c0] sm:$0xff]
    %v72 = vld [vmem:[%s0 + $0x1c8] sm:$0xff]
    %v73 = vld [vmem:[%s0 + $0x1d0] sm:$0xff]
    %v74 = vld [vmem:[%s0 + $0x1d8] sm:$0xff]
    %v75 = vld [vmem:[%s0 + $0x1e0] sm:$0xff]
    %v76 = vld [vmem:[%s0 + $0x1e8] sm:$0xff]
    %v77 = vld [vmem:[%s0 + $0x1f0] sm:$0xff]
    %v78 = vld [vmem:[%s0 + $0x1f8] sm:$0xff]
    %v79 = vld [vmem:[%s0 + $0x200] sm:$0xff]
    %v80 = vld [vmem:[%s0 + $0x208] sm:$0xff]
    %v81 = vld [vmem:[%s0 + $0x210] sm:$0xff]
    %v82 = vld [vmem:[%s0 + $0x218] sm:$0xff]
    %v83 = vld [vmem:[%s0 + $0x220] sm:$0xff]
    %v84 = vld [vmem:[%s0 + $0x228] sm:$0xff]
    %v85 = vld [vmem:[%s0 + $0x230] sm:$0xff]
    %v86 = vld [vmem:[%s0 + $0x238] sm:$0xff]
    %v87 = vld [vmem:[%s0 + $0x240] sm:$0xff]
    %v88 = vld [vmem:[%s0 + $0x248] sm:$0xff]
    %v89 = vld [vmem:[%s0 + $0x250] sm:$0xff]
    %v90 = vld [vmem:[%s0 + $0x258] sm:$0xff]
    %v91 = vld [vmem:[%s0 + $0x260] sm:$0xff]
    %v92 = vld [vmem:[%s0 + $0x268] sm:$0xff]
    %v93 = vld [vmem:[%s0 + $0x270] sm:$0xff]
    %v94 = vld [vmem:[%s0 + $0x278] sm:$0xff]
    %v95 = vld [vmem:[%s0 + $0x280] sm:$0xff]
    %v96 = vld [vmem:[%s0 + $0x288] sm:$0xff]
    %v97 = vld [vmem:[%s0 + $0x290] sm:$0xff]
    %v98 = vld [vmem:[%s0 + $0x298] sm:$0xff]
    %v99 = vld [vmem:[%s0 + $0x2a0] sm:$0xff]
    %v100 = vld [vmem:[%s0 + $0x2a8] sm:$0xff]
    %v101 = vld [vmem:[%s0 + $0x2b0] sm:$0xff]
    %v102 = vld [vmem:[%s0 + $0x2b8] sm:$0xff]
    %v103 = vld [vmem:[%s0 + $0x2c0] sm:$0xff]
    %v104 = vld [vmem:[%s0 + $0x2c8] sm:$0xff]
    %v105 = vld [vmem:[%s0 + $0x2d0] sm:$0xff]
    %v106 = vld [vmem:[%s0 + $0x2d8] sm:$0xff]
    %v107 = vld [vmem:[%s0 + $0x2e0] sm:$0xff]
    %v108 = vld [vmem:[%s0 + $0x2e8] sm:$0xff]
    %v109 = vld [vmem:[%s0 + $0x2f0] sm:$0xff]
    %v110 = vld [vmem:[%s0 + $0x2f8] sm:$0xff]
    %v111 = vld [vmem:[%s0 + $0x300] sm:$0xff]
    %v112 = vld [vmem:[%s0 + $0x308] sm:$0xff]
    %v113 = vld [vmem:[%s0 + $0x310] sm:$0xff]
    %v114 = vld [vmem:[%s0 + $0x318] sm:$0xff]
    %v115 = vld [vmem:[%s0 + $0x320] sm:$0xff]
    %v116 = vld [vmem:[%s0 + $0x328] sm:$0xff]
    %v117 = vld [vmem:[%s0 + $0x330] sm:$0xff]
    %v118 = vld [vmem:[%s0 + $0x338] sm:$0xff]
    %v119 = vld [vmem:[%s0 + $0x340] sm:$0xff]
    %v120 = vld [vmem:[%s0 + $0x348] sm:$0xff]
    %v121 = vld [vmem:[%s0 + $0x350] sm:$0xff]
    %v122 = vld [vmem:[%s0 + $0x358] sm:$0xff]
    %v123 = vld [vmem:[%s0 + $0x360] sm:$0xff]
    %v124 = vld [vmem:[%s0 + $0x368] sm:$0xff]
    %v125 = vld [vmem:[%s0 + $0x370] sm:$0xff]
    %v126 = vld [vmem:[%s0 + $0x378] sm:$0xff]
    %v127 = vld [vmem:[%s0 + $0x380] sm:$0xff]
    %v128 = vld [vmem:[%s0 + $0x388] sm:$0xff]
    %v129 = vld [vmem:[%s0 + $0x390] sm:$0xff]
    %v130 = vld [vmem:[%s0 + $0x398] sm:$0xff]
    %v131 = vld [vmem:[%s0 + $0x3a0] sm:$0xff]
    %v132 = vld [vmem:[%s0 + $0x3a8] sm:$0xff]
    %v133 = vld [vmem:[%s0 + $0x3b0] sm:$0xff]
    %v134 = vld [vmem:[%s0 + $0x3b8] sm:$0xff]
    %v135 = vld [vmem:[%s0 + $0x3c0] sm:$0xff]
    %v136 = vld [vmem:[%s0 + $0x3c8] sm:$0xff]
    %v137 = vld [vmem:[%s0 + $0x3d0] sm:$0xff]
    %v138 = vld [vmem:[%s0 + $0x3d8] sm:$0xff]
    %v139 = vld [vmem:[%s0 + $0x3e0] sm:$0xff]
    %v140 = vld [vmem:[%s0 + $0x3e8] sm:$0xff]
    %v141 = vld [vmem:[%s0 + $0x3f0] sm:$0xff]
    %v142 = vld [vmem:[%s0 + $0x3f8] sm:$0xff]
    %v143 = vld [vmem:[%s1] sm:$0xff]
    %v144 = vld [vmem:[%s1 + $0x8] sm:$0xff]
    %v145 = vld [vmem:[%s1 + $0x10] sm:$0xff]
    %v146 = vld [vmem:[%s1 + $0x18] sm:$0xff]
    %v147 = vld [vmem:[%s1 + $0x20] sm:$0xff]
    %v148 = vld [vmem:[%s1 + $0x28] sm:$0xff]
    %v149 = vld [vmem:[%s1 + $0x30] sm:$0xff]
    %v150 = vld [vmem:[%s1 + $0x38] sm:$0xff]
    %v151 = vld [vmem:[%s1 + $0x40] sm:$0xff]
    %v152 = vld [vmem:[%s1 + $0x48] sm:$0xff]
    %v153 = vld [vmem:[%s1 + $0x50] sm:$0xff]
    %v154 = vld [vmem:[%s1 + $0x58] sm:$0xff]
    %v155 = vld [vmem:[%s1 + $0x60] sm:$0xff]
    %v156 = vld [vmem:[%s1 + $0x68] sm:$0xff]
    %v157 = vld [vmem:[%s1 + $0x70] sm:$0xff]
    %v158 = vld [vmem:[%s1 + $0x78] sm:$0xff]
    %v159 = vld [vmem:[%s1 + $0x80] sm:$0xff]
    %v160 = vld [vmem:[%s1 + $0x88] sm:$0xff]
    %v161 = vld [vmem:[%s2] sm:$0x1]
    %v163 = vlaneseq
    %v164 = vshrl.u32 %v163, 7
    %v165 = vsub.s32 0, %v164
    %v166 = vrot.slane %v161, %v165
    %vm168 = vcmask 130048
    %v170 = vsel %vm168, %v16, 0
    %v173 = vsel %vm168, %v18, 0
    %v176 = vsel %vm168, %v20, 0
    %v179 = vsel %vm168, %v22, 0
    %v182 = vsel %vm168, %v24, 0
    %v185 = vsel %vm168, %v26, 0
    %v188 = vsel %vm168, %v28, 0
    %v191 = vsel %vm168, %v30, 0
    %v194 = vsel %vm168, %v32, 0
    %v197 = vsel %vm168, %v34, 0
    %v200 = vsel %vm168, %v36, 0
    %v203 = vsel %vm168, %v38, 0
    %v206 = vsel %vm168, %v40, 0
    %v209 = vsel %vm168, %v42, 0
    %v212 = vsel %vm168, %v44, 0
    %v215 = vsel %vm168, %v46, 0
    %v218 = vsel %vm168, %v48, 0
    %v221 = vsel %vm168, %v50, 0
    %v224 = vsel %vm168, %v52, 0
    %v227 = vsel %vm168, %v54, 0
    %v230 = vsel %vm168, %v56, 0
    %v233 = vsel %vm168, %v58, 0
    %v236 = vsel %vm168, %v60, 0
    %v239 = vsel %vm168, %v62, 0
    %v242 = vsel %vm168, %v64, 0
    %v245 = vsel %vm168, %v66, 0
    %v248 = vsel %vm168, %v68, 0
    %v251 = vsel %vm168, %v70, 0
    %v254 = vsel %vm168, %v72, 0
    %v257 = vsel %vm168, %v74, 0
    %v260 = vsel %vm168, %v76, 0
    %v263 = vsel %vm168, %v78, 0
    %v266 = vsel %vm168, %v80, 0
    %v269 = vsel %vm168, %v82, 0
    %v272 = vsel %vm168, %v84, 0
    %v275 = vsel %vm168, %v86, 0
    %v278 = vsel %vm168, %v88, 0
    %v281 = vsel %vm168, %v90, 0
    %v284 = vsel %vm168, %v92, 0
    %v287 = vsel %vm168, %v94, 0
    %v290 = vsel %vm168, %v96, 0
    %v293 = vsel %vm168, %v98, 0
    %v296 = vsel %vm168, %v100, 0
    %v299 = vsel %vm168, %v102, 0
    %v302 = vsel %vm168, %v104, 0
    %v305 = vsel %vm168, %v106, 0
    %v308 = vsel %vm168, %v108, 0
    %v311 = vsel %vm168, %v110, 0
    %v314 = vsel %vm168, %v112, 0
    %v317 = vsel %vm168, %v114, 0
    %v320 = vsel %vm168, %v116, 0
    %v323 = vsel %vm168, %v118, 0
    %v326 = vsel %vm168, %v120, 0
    %v329 = vsel %vm168, %v122, 0
    %v332 = vsel %vm168, %v124, 0
    %v335 = vsel %vm168, %v126, 0
    %v338 = vsel %vm168, %v128, 0
    %v341 = vsel %vm168, %v130, 0
    %v344 = vsel %vm168, %v132, 0
    %v347 = vsel %vm168, %v134, 0
    %v350 = vsel %vm168, %v136, 0
    %v353 = vsel %vm168, %v138, 0
    %v356 = vsel %vm168, %v140, 0
    %v359 = vsel %vm168, %v142, 0
    %361 = vmatprep.subr.mxu0 0.0
    %362 = vmatpush1.msra.mxu0 %v143
    %363 = vmatprep.subr.mxu0 0.0
    %364 = vmatpush1.msra.mxu0 %v144
    %365 = vmatprep.subr.mxu0 0.0
    %366 = vmatpush1.msra.mxu0 %v145
    %367 = vmatprep.subr.mxu0 0.0
    %368 = vmatpush1.msra.mxu0 %v146
    %369 = vmatprep.subr.mxu0 0.0
    %370 = vmatpush1.msra.mxu0 %v147
    %371 = vmatprep.subr.mxu0 0.0
    %372 = vmatpush1.msra.mxu0 %v148
    %373 = vmatprep.subr.mxu0 0.0
    %374 = vmatpush1.msra.mxu0 %v149
    %375 = vmatprep.subr.mxu0 0.0
    %376 = vmatpush1.msra.mxu0 %v150
    %377 = vmatprep.subr.mxu0 0.0
    %378 = vmatpush1.msra.mxu0 %v151
    %379 = vmatprep.subr.mxu0 0.0
    %380 = vmatpush1.msra.mxu0 %v152
    %381 = vmatprep.subr.mxu0 0.0
    %382 = vmatpush1.msra.mxu0 %v153
    %383 = vmatprep.subr.mxu0 0.0
    %384 = vmatpush1.msra.mxu0 %v154
    %385 = vmatprep.subr.mxu0 0.0
    %386 = vmatpush1.msra.mxu0 %v155
    %387 = vmatprep.subr.mxu0 0.0
    %388 = vmatpush1.msra.mxu0 %v156
    %389 = vmatprep.subr.mxu0 0.0
    %390 = vmatpush1.msra.mxu0 %v157
    %391 = vmatprep.subr.mxu0 0.0
    %392 = vmatpush1.msra.mxu0 %v158
    %393 = vmatprep.subr.mxu0 0.0
    %394 = vmatpush1.msra.mxu0 %v159
    %395 = vmatprep.subr.mxu0 0.0
    %396 = vmatpush1.msra.mxu0 %v160
    %397 = vmatprep.subr.mxu0 0.0
    %398 = vmatpush1.msra.mxu0 0.0
    %399 = vmatprep.subr.mxu0 0.0
    %400 = vmatpush1.msra.mxu0 0.0
    %401 = vmatprep.subr.mxu0 0.0
    %402 = vmatpush1.msra.mxu0 0.0
    %403 = vmatprep.subr.mxu0 0.0
    %404 = vmatpush1.msra.mxu0 0.0
    %405 = vmatprep.subr.mxu0 0.0
    %406 = vmatpush1.msra.mxu0 0.0
    %407 = vmatprep.subr.mxu0 0.0
    %408 = vmatpush1.msra.mxu0 0.0
    %409 = vmatprep.subr.mxu0 0.0
    %410 = vmatpush1.msra.mxu0 0.0
    %411 = vmatprep.subr.mxu0 0.0
    %412 = vmatpush1.msra.mxu0 0.0
    %413 = vmatprep.subr.mxu0 0.0
    %414 = vmatpush1.msra.mxu0 0.0
    %415 = vmatprep.subr.mxu0 0.0
    %416 = vmatpush1.msra.mxu0 0.0
    %417 = vmatprep.subr.mxu0 0.0
    %418 = vmatpush1.msra.mxu0 0.0
    %419 = vmatprep.subr.mxu0 0.0
    %420 = vmatpush1.msra.mxu0 0.0
    %421 = vmatprep.subr.mxu0 0.0
    %422 = vmatpush1.msra.mxu0 0.0
    %423 = vmatprep.subr.mxu0 0.0
    %424 = vmatpush1.msra.mxu0 0.0
    %425 = vmatprep.mubr.f32.mxu0 %v170
    %426 = vmatmul.mubr.f32.gmra.mrb[0].mxu0 %v15
    %v427 = vpop.f32.mrb[0].mxu0
    %v428 = vadd.f32 %v166, %v427
    %v429 = vpop.f32.mrb[0].mxu0
    %430 = vmatprep.mubr.f32.mxu0 %v173
    %431 = vmatmul.mubr.f32.gmra.mrb[0].mxu0 %v17
    %v432 = vpop.f32.mrb[0].mxu0
    %v433 = vadd.f32 %v166, %v432
    %v434 = vpop.f32.mrb[0].mxu0
    %435 = vmatprep.mubr.f32.mxu0 %v176
    %436 = vmatmul.mubr.f32.gmra.mrb[0].mxu0 %v19
    %v437 = vpop.f32.mrb[0].mxu0
    %v438 = vadd.f32 %v166, %v437
    %v439 = vpop.f32.mrb[0].mxu0
    %440 = vmatprep.mubr.f32.mxu0 %v179
    %441 = vmatmul.mubr.f32.gmra.mrb[0].mxu0 %v21
    %v442 = vpop.f32.mrb[0].mxu0
    %v443 = vadd.f32 %v166, %v442
    %v444 = vpop.f32.mrb[0].mxu0
    %445 = vmatprep.mubr.f32.mxu0 %v182
    %446 = vmatmul.mubr.f32.gmra.mrb[0].mxu0 %v23
    %v447 = vpop.f32.mrb[0].mxu0
    %v448 = vadd.f32 %v166, %v447
    %v449 = vpop.f32.mrb[0].mxu0
    %450 = vmatprep.mubr.f32.mxu0 %v185
    %451 = vmatmul.mubr.f32.gmra.mrb[0].mxu0 %v25
    %v452 = vpop.f32.mrb[0].mxu0
    %v453 = vadd.f32 %v166, %v452
    %v454 = vpop.f32.mrb[0].mxu0
    %455 = vmatprep.mubr.f32.mxu0 %v188
    %456 = vmatmul.mubr.f32.gmra.mrb[0].mxu0 %v27
    %v457 = vpop.f32.mrb[0].mxu0
    %v458 = vadd.f32 %v166, %v457
    %v459 = vpop.f32.mrb[0].mxu0
    %460 = vmatprep.mubr.f32.mxu0 %v191
    %461 = vmatmul.mubr.f32.gmra.mrb[0].mxu0 %v29
    %v462 = vpop.f32.mrb[0].mxu0
    %v463 = vadd.f32 %v166, %v462
    %v464 = vpop.f32.mrb[0].mxu0
    %465 = vmatprep.mubr.f32.mxu0 %v194
    %466 = vmatmul.mubr.f32.gmra.mrb[0].mxu0 %v31
    %v467 = vpop.f32.mrb[0].mxu0
    %v468 = vadd.f32 %v166, %v467
    %v469 = vpop.f32.mrb[0].mxu0
    %470 = vmatprep.mubr.f32.mxu0 %v197
    %471 = vmatmul.mubr.f32.gmra.mrb[0].mxu0 %v33
    %v472 = vpop.f32.mrb[0].mxu0
    %v473 = vadd.f32 %v166, %v472
    %v474 = vpop.f32.mrb[0].mxu0
    %475 = vmatprep.mubr.f32.mxu0 %v200
    %476 = vmatmul.mubr.f32.gmra.mrb[0].mxu0 %v35
    %v477 = vpop.f32.mrb[0].mxu0
    %v478 = vadd.f32 %v166, %v477
    %v479 = vpop.f32.mrb[0].mxu0
    %480 = vmatprep.mubr.f32.mxu0 %v203
    %481 = vmatmul.mubr.f32.gmra.mrb[0].mxu0 %v37
    %v482 = vpop.f32.mrb[0].mxu0
    %v483 = vadd.f32 %v166, %v482
    %v484 = vpop.f32.mrb[0].mxu0
    %485 = vmatprep.mubr.f32.mxu0 %v206
    %486 = vmatmul.mubr.f32.gmra.mrb[0].mxu0 %v39
    %v487 = vpop.f32.mrb[0].mxu0
    %v488 = vadd.f32 %v166, %v487
    %v489 = vpop.f32.mrb[0].mxu0
    %490 = vmatprep.mubr.f32.mxu0 %v209
    %491 = vmatmul.mubr.f32.gmra.mrb[0].mxu0 %v41
    %v492 = vpop.f32.mrb[0].mxu0
    %v493 = vadd.f32 %v166, %v492
    %v494 = vpop.f32.mrb[0].mxu0
    %495 = vmatprep.mubr.f32.mxu0 %v212
    %496 = vmatmul.mubr.f32.gmra.mrb[0].mxu0 %v43
    %v497 = vpop.f32.mrb[0].mxu0
    %v498 = vadd.f32 %v166, %v497
    %v499 = vpop.f32.mrb[0].mxu0
    %500 = vmatprep.mubr.f32.mxu0 %v215
    %501 = vmatmul.mubr.f32.gmra.mrb[0].mxu0 %v45
    %v502 = vpop.f32.mrb[0].mxu0
    %v503 = vadd.f32 %v166, %v502
    %v504 = vpop.f32.mrb[0].mxu0
    %505 = vmatprep.mubr.f32.mxu0 %v218
    %506 = vmatmul.mubr.f32.gmra.mrb[0].mxu0 %v47
    %v507 = vpop.f32.mrb[0].mxu0
    %v508 = vadd.f32 %v166, %v507
    %v509 = vpop.f32.mrb[0].mxu0
    %510 = vmatprep.mubr.f32.mxu0 %v221
    %511 = vmatmul.mubr.f32.gmra.mrb[0].mxu0 %v49
    %v512 = vpop.f32.mrb[0].mxu0
    %v513 = vadd.f32 %v166, %v512
    %v514 = vpop.f32.mrb[0].mxu0
    %515 = vmatprep.mubr.f32.mxu0 %v224
    %516 = vmatmul.mubr.f32.gmra.mrb[0].mxu0 %v51
    %v517 = vpop.f32.mrb[0].mxu0
    %v518 = vadd.f32 %v166, %v517
    %v519 = vpop.f32.mrb[0].mxu0
    %520 = vmatprep.mubr.f32.mxu0 %v227
    %521 = vmatmul.mubr.f32.gmra.mrb[0].mxu0 %v53
    %v522 = vpop.f32.mrb[0].mxu0
    %v523 = vadd.f32 %v166, %v522
    %v524 = vpop.f32.mrb[0].mxu0
    %525 = vmatprep.mubr.f32.mxu0 %v230
    %526 = vmatmul.mubr.f32.gmra.mrb[0].mxu0 %v55
    %v527 = vpop.f32.mrb[0].mxu0
    %v528 = vadd.f32 %v166, %v527
    %v529 = vpop.f32.mrb[0].mxu0
    %530 = vmatprep.mubr.f32.mxu0 %v233
    %531 = vmatmul.mubr.f32.gmra.mrb[0].mxu0 %v57
    %v532 = vpop.f32.mrb[0].mxu0
    %v533 = vadd.f32 %v166, %v532
    %v534 = vpop.f32.mrb[0].mxu0
    %535 = vmatprep.mubr.f32.mxu0 %v236
    %536 = vmatmul.mubr.f32.gmra.mrb[0].mxu0 %v59
    %v537 = vpop.f32.mrb[0].mxu0
    %v538 = vadd.f32 %v166, %v537
    %v539 = vpop.f32.mrb[0].mxu0
    %540 = vmatprep.mubr.f32.mxu0 %v239
    %541 = vmatmul.mubr.f32.gmra.mrb[0].mxu0 %v61
    %v542 = vpop.f32.mrb[0].mxu0
    %v543 = vadd.f32 %v166, %v542
    %v544 = vpop.f32.mrb[0].mxu0
    %545 = vmatprep.mubr.f32.mxu0 %v242
    %546 = vmatmul.mubr.f32.gmra.mrb[0].mxu0 %v63
    %v547 = vpop.f32.mrb[0].mxu0
    %v548 = vadd.f32 %v166, %v547
    %v549 = vpop.f32.mrb[0].mxu0
    %550 = vmatprep.mubr.f32.mxu0 %v245
    %551 = vmatmul.mubr.f32.gmra.mrb[0].mxu0 %v65
    %v552 = vpop.f32.mrb[0].mxu0
    %v553 = vadd.f32 %v166, %v552
    %v554 = vpop.f32.mrb[0].mxu0
    %555 = vmatprep.mubr.f32.mxu0 %v248
    %556 = vmatmul.mubr.f32.gmra.mrb[0].mxu0 %v67
    %v557 = vpop.f32.mrb[0].mxu0
    %v558 = vadd.f32 %v166, %v557
    %v559 = vpop.f32.mrb[0].mxu0
    %560 = vmatprep.mubr.f32.mxu0 %v251
    %561 = vmatmul.mubr.f32.gmra.mrb[0].mxu0 %v69
    %v562 = vpop.f32.mrb[0].mxu0
    %v563 = vadd.f32 %v166, %v562
    %v564 = vpop.f32.mrb[0].mxu0
    %565 = vmatprep.mubr.f32.mxu0 %v254
    %566 = vmatmul.mubr.f32.gmra.mrb[0].mxu0 %v71
    %v567 = vpop.f32.mrb[0].mxu0
    %v568 = vadd.f32 %v166, %v567
    %v569 = vpop.f32.mrb[0].mxu0
    %570 = vmatprep.mubr.f32.mxu0 %v257
    %571 = vmatmul.mubr.f32.gmra.mrb[0].mxu0 %v73
    %v572 = vpop.f32.mrb[0].mxu0
    %v573 = vadd.f32 %v166, %v572
    %v574 = vpop.f32.mrb[0].mxu0
    %575 = vmatprep.mubr.f32.mxu0 %v260
    %576 = vmatmul.mubr.f32.gmra.mrb[0].mxu0 %v75
    %v577 = vpop.f32.mrb[0].mxu0
    %v578 = vadd.f32 %v166, %v577
    %v579 = vpop.f32.mrb[0].mxu0
    %580 = vmatprep.mubr.f32.mxu0 %v263
    %581 = vmatmul.mubr.f32.gmra.mrb[0].mxu0 %v77
    %v582 = vpop.f32.mrb[0].mxu0
    %v583 = vadd.f32 %v166, %v582
    %v584 = vpop.f32.mrb[0].mxu0
    %585 = vmatprep.mubr.f32.mxu0 %v266
    %586 = vmatmul.mubr.f32.gmra.mrb[0].mxu0 %v79
    %v587 = vpop.f32.mrb[0].mxu0
    %v588 = vadd.f32 %v166, %v587
    %v589 = vpop.f32.mrb[0].mxu0
    %590 = vmatprep.mubr.f32.mxu0 %v269
    %591 = vmatmul.mubr.f32.gmra.mrb[0].mxu0 %v81
    %v592 = vpop.f32.mrb[0].mxu0
    %v593 = vadd.f32 %v166, %v592
    %v594 = vpop.f32.mrb[0].mxu0
    %595 = vmatprep.mubr.f32.mxu0 %v272
    %596 = vmatmul.mubr.f32.gmra.mrb[0].mxu0 %v83
    %v597 = vpop.f32.mrb[0].mxu0
    %v598 = vadd.f32 %v166, %v597
    %v599 = vpop.f32.mrb[0].mxu0
    %600 = vmatprep.mubr.f32.mxu0 %v275
    %601 = vmatmul.mubr.f32.gmra.mrb[0].mxu0 %v85
    %v602 = vpop.f32.mrb[0].mxu0
    %v603 = vadd.f32 %v166, %v602
    %v604 = vpop.f32.mrb[0].mxu0
    %605 = vmatprep.mubr.f32.mxu0 %v278
    %606 = vmatmul.mubr.f32.gmra.mrb[0].mxu0 %v87
    %v607 = vpop.f32.mrb[0].mxu0
    %v608 = vadd.f32 %v166, %v607
    %v609 = vpop.f32.mrb[0].mxu0
    %610 = vmatprep.mubr.f32.mxu0 %v281
    %611 = vmatmul.mubr.f32.gmra.mrb[0].mxu0 %v89
    %v612 = vpop.f32.mrb[0].mxu0
    %v613 = vadd.f32 %v166, %v612
    %v614 = vpop.f32.mrb[0].mxu0
    %615 = vmatprep.mubr.f32.mxu0 %v284
    %616 = vmatmul.mubr.f32.gmra.mrb[0].mxu0 %v91
    %v617 = vpop.f32.mrb[0].mxu0
    %v618 = vadd.f32 %v166, %v617
    %v619 = vpop.f32.mrb[0].mxu0
    %620 = vmatprep.mubr.f32.mxu0 %v287
    %621 = vmatmul.mubr.f32.gmra.mrb[0].mxu0 %v93
    %v622 = vpop.f32.mrb[0].mxu0
    %v623 = vadd.f32 %v166, %v622
    %v624 = vpop.f32.mrb[0].mxu0
    %625 = vmatprep.mubr.f32.mxu0 %v290
    %626 = vmatmul.mubr.f32.gmra.mrb[0].mxu0 %v95
    %v627 = vpop.f32.mrb[0].mxu0
    %v628 = vadd.f32 %v166, %v627
    %v629 = vpop.f32.mrb[0].mxu0
    %630 = vmatprep.mubr.f32.mxu0 %v293
    %631 = vmatmul.mubr.f32.gmra.mrb[0].mxu0 %v97
    %v632 = vpop.f32.mrb[0].mxu0
    %v633 = vadd.f32 %v166, %v632
    %v634 = vpop.f32.mrb[0].mxu0
    %635 = vmatprep.mubr.f32.mxu0 %v296
    %636 = vmatmul.mubr.f32.gmra.mrb[0].mxu0 %v99
    %v637 = vpop.f32.mrb[0].mxu0
    %v638 = vadd.f32 %v166, %v637
    %v639 = vpop.f32.mrb[0].mxu0
    %640 = vmatprep.mubr.f32.mxu0 %v299
    %641 = vmatmul.mubr.f32.gmra.mrb[0].mxu0 %v101
    %v642 = vpop.f32.mrb[0].mxu0
    %v643 = vadd.f32 %v166, %v642
    %v644 = vpop.f32.mrb[0].mxu0
    %645 = vmatprep.mubr.f32.mxu0 %v302
    %646 = vmatmul.mubr.f32.gmra.mrb[0].mxu0 %v103
    %v647 = vpop.f32.mrb[0].mxu0
    %v648 = vadd.f32 %v166, %v647
    %v649 = vpop.f32.mrb[0].mxu0
    %650 = vmatprep.mubr.f32.mxu0 %v305
    %651 = vmatmul.mubr.f32.gmra.mrb[0].mxu0 %v105
    %v652 = vpop.f32.mrb[0].mxu0
    %v653 = vadd.f32 %v166, %v652
    %v654 = vpop.f32.mrb[0].mxu0
    %655 = vmatprep.mubr.f32.mxu0 %v308
    %656 = vmatmul.mubr.f32.gmra.mrb[0].mxu0 %v107
    %v657 = vpop.f32.mrb[0].mxu0
    %v658 = vadd.f32 %v166, %v657
    %v659 = vpop.f32.mrb[0].mxu0
    %660 = vmatprep.mubr.f32.mxu0 %v311
    %661 = vmatmul.mubr.f32.gmra.mrb[0].mxu0 %v109
    %v662 = vpop.f32.mrb[0].mxu0
    %v663 = vadd.f32 %v166, %v662
    %v664 = vpop.f32.mrb[0].mxu0
    %665 = vmatprep.mubr.f32.mxu0 %v314
    %666 = vmatmul.mubr.f32.gmra.mrb[0].mxu0 %v111
    %v667 = vpop.f32.mrb[0].mxu0
    %v668 = vadd.f32 %v166, %v667
    %v669 = vpop.f32.mrb[0].mxu0
    %670 = vmatprep.mubr.f32.mxu0 %v317
    %671 = vmatmul.mubr.f32.gmra.mrb[0].mxu0 %v113
    %v672 = vpop.f32.mrb[0].mxu0
    %v673 = vadd.f32 %v166, %v672
    %v674 = vpop.f32.mrb[0].mxu0
    %675 = vmatprep.mubr.f32.mxu0 %v320
    %676 = vmatmul.mubr.f32.gmra.mrb[0].mxu0 %v115
    %v677 = vpop.f32.mrb[0].mxu0
    %v678 = vadd.f32 %v166, %v677
    %v679 = vpop.f32.mrb[0].mxu0
    %680 = vmatprep.mubr.f32.mxu0 %v323
    %681 = vmatmul.mubr.f32.gmra.mrb[0].mxu0 %v117
    %v682 = vpop.f32.mrb[0].mxu0
    %v683 = vadd.f32 %v166, %v682
    %v684 = vpop.f32.mrb[0].mxu0
    %685 = vmatprep.mubr.f32.mxu0 %v326
    %686 = vmatmul.mubr.f32.gmra.mrb[0].mxu0 %v119
    %v687 = vpop.f32.mrb[0].mxu0
    %v688 = vadd.f32 %v166, %v687
    %v689 = vpop.f32.mrb[0].mxu0
    %690 = vmatprep.mubr.f32.mxu0 %v329
    %691 = vmatmul.mubr.f32.gmra.mrb[0].mxu0 %v121
    %v692 = vpop.f32.mrb[0].mxu0
    %v693 = vadd.f32 %v166, %v692
    %v694 = vpop.f32.mrb[0].mxu0
    %695 = vmatprep.mubr.f32.mxu0 %v332
    %696 = vmatmul.mubr.f32.gmra.mrb[0].mxu0 %v123
    %v697 = vpop.f32.mrb[0].mxu0
    %v698 = vadd.f32 %v166, %v697
    %v699 = vpop.f32.mrb[0].mxu0
    %700 = vmatprep.mubr.f32.mxu0 %v335
    %701 = vmatmul.mubr.f32.gmra.mrb[0].mxu0 %v125
    %v702 = vpop.f32.mrb[0].mxu0
    %v703 = vadd.f32 %v166, %v702
    %v704 = vpop.f32.mrb[0].mxu0
    %705 = vmatprep.mubr.f32.mxu0 %v338
    %706 = vmatmul.mubr.f32.gmra.mrb[0].mxu0 %v127
    %v707 = vpop.f32.mrb[0].mxu0
    %v708 = vadd.f32 %v166, %v707
    %v709 = vpop.f32.mrb[0].mxu0
    %710 = vmatprep.mubr.f32.mxu0 %v341
    %711 = vmatmul.mubr.f32.gmra.mrb[0].mxu0 %v129
    %v712 = vpop.f32.mrb[0].mxu0
    %v713 = vadd.f32 %v166, %v712
    %v714 = vpop.f32.mrb[0].mxu0
    %715 = vmatprep.mubr.f32.mxu0 %v344
    %716 = vmatmul.mubr.f32.gmra.mrb[0].mxu0 %v131
    %v717 = vpop.f32.mrb[0].mxu0
    %v718 = vadd.f32 %v166, %v717
    %v719 = vpop.f32.mrb[0].mxu0
    %720 = vmatprep.mubr.f32.mxu0 %v347
    %721 = vmatmul.mubr.f32.gmra.mrb[0].mxu0 %v133
    %v722 = vpop.f32.mrb[0].mxu0
    %v723 = vadd.f32 %v166, %v722
    %v724 = vpop.f32.mrb[0].mxu0
    %725 = vmatprep.mubr.f32.mxu0 %v350
    %726 = vmatmul.mubr.f32.gmra.mrb[0].mxu0 %v135
    %v727 = vpop.f32.mrb[0].mxu0
    %v728 = vadd.f32 %v166, %v727
    %v729 = vpop.f32.mrb[0].mxu0
    %730 = vmatprep.mubr.f32.mxu0 %v353
    %731 = vmatmul.mubr.f32.gmra.mrb[0].mxu0 %v137
    %v732 = vpop.f32.mrb[0].mxu0
    %v733 = vadd.f32 %v166, %v732
    %v734 = vpop.f32.mrb[0].mxu0
    %735 = vmatprep.mubr.f32.mxu0 %v356
    %736 = vmatmul.mubr.f32.gmra.mrb[0].mxu0 %v139
    %v737 = vpop.f32.mrb[0].mxu0
    %v738 = vadd.f32 %v166, %v737
    %v739 = vpop.f32.mrb[0].mxu0
    %740 = vmatprep.mubr.f32.mxu0 %v359
    %741 = vmatmul.mubr.f32.gmra.mrb[0].mxu0 %v141
    %v742 = vpop.f32.mrb[0].mxu0
    %v743 = vadd.f32 %v166, %v742
    %v744 = vpop.f32.mrb[0].mxu0
    %745 = vdwg.mxu0
    %vm746 = vcmask 261120
    %747 = vst.msk [vmem:[#allocation2] sm:$0xff] %vm746, %v428
    %748 = vst.msk [vmem:[#allocation2 + $0x8] sm:$0xff] %vm746, %v433
    %749 = vst.msk [vmem:[#allocation2 + $0x10] sm:$0xff] %vm746, %v438
    %750 = vst.msk [vmem:[#allocation2 + $0x18] sm:$0xff] %vm746, %v443
    %751 = vst.msk [vmem:[#allocation2 + $0x20] sm:$0xff] %vm746, %v448
    %752 = vst.msk [vmem:[#allocation2 + $0x28] sm:$0xff] %vm746, %v453
    %753 = vst.msk [vmem:[#allocation2 + $0x30] sm:$0xff] %vm746, %v458
    %754 = vst.msk [vmem:[#allocation2 + $0x38] sm:$0xff] %vm746, %v463
    %755 = vst.msk [vmem:[#allocation2 + $0x40] sm:$0xff] %vm746, %v468
    %756 = vst.msk [vmem:[#allocation2 + $0x48] sm:$0xff] %vm746, %v473
    %757 = vst.msk [vmem:[#allocation2 + $0x50] sm:$0xff] %vm746, %v478
    %758 = vst.msk [vmem:[#allocation2 + $0x58] sm:$0xff] %vm746, %v483
    %759 = vst.msk [vmem:[#allocation2 + $0x60] sm:$0xff] %vm746, %v488
    %760 = vst.msk [vmem:[#allocation2 + $0x68] sm:$0xff] %vm746, %v493
    %761 = vst.msk [vmem:[#allocation2 + $0x70] sm:$0xff] %vm746, %v498
    %762 = vst.msk [vmem:[#allocation2 + $0x78] sm:$0xff] %vm746, %v503
    %763 = vst.msk [vmem:[#allocation2 + $0x80] sm:$0xff] %vm746, %v508
    %764 = vst.msk [vmem:[#allocation2 + $0x88] sm:$0xff] %vm746, %v513
    %765 = vst.msk [vmem:[#allocation2 + $0x90] sm:$0xff] %vm746, %v518
    %766 = vst.msk [vmem:[#allocation2 + $0x98] sm:$0xff] %vm746, %v523
    %767 = vst.msk [vmem:[#allocation2 + $0xa0] sm:$0xff] %vm746, %v528
    %768 = vst.msk [vmem:[#allocation2 + $0xa8] sm:$0xff] %vm746, %v533
    %769 = vst.msk [vmem:[#allocation2 + $0xb0] sm:$0xff] %vm746, %v538
    %770 = vst.msk [vmem:[#allocation2 + $0xb8] sm:$0xff] %vm746, %v543
    %771 = vst.msk [vmem:[#allocation2 + $0xc0] sm:$0xff] %vm746, %v548
    %772 = vst.msk [vmem:[#allocation2 + $0xc8] sm:$0xff] %vm746, %v553
    %773 = vst.msk [vmem:[#allocation2 + $0xd0] sm:$0xff] %vm746, %v558
    %774 = vst.msk [vmem:[#allocation2 + $0xd8] sm:$0xff] %vm746, %v563
    %775 = vst.msk [vmem:[#allocation2 + $0xe0] sm:$0xff] %vm746, %v568
    %776 = vst.msk [vmem:[#allocation2 + $0xe8] sm:$0xff] %vm746, %v573
    %777 = vst.msk [vmem:[#allocation2 + $0xf0] sm:$0xff] %vm746, %v578
    %778 = vst.msk [vmem:[#allocation2 + $0xf8] sm:$0xff] %vm746, %v583
    %779 = vst.msk [vmem:[#allocation2 + $0x100] sm:$0xff] %vm746, %v588
    %780 = vst.msk [vmem:[#allocation2 + $0x108] sm:$0xff] %vm746, %v593
    %781 = vst.msk [vmem:[#allocation2 + $0x110] sm:$0xff] %vm746, %v598
    %782 = vst.msk [vmem:[#allocation2 + $0x118] sm:$0xff] %vm746, %v603
    %783 = vst.msk [vmem:[#allocation2 + $0x120] sm:$0xff] %vm746, %v608
    %784 = vst.msk [vmem:[#allocation2 + $0x128] sm:$0xff] %vm746, %v613
    %785 = vst.msk [vmem:[#allocation2 + $0x130] sm:$0xff] %vm746, %v618
    %786 = vst.msk [vmem:[#allocation2 + $0x138] sm:$0xff] %vm746, %v623
    %787 = vst.msk [vmem:[#allocation2 + $0x140] sm:$0xff] %vm746, %v628
    %788 = vst.msk [vmem:[#allocation2 + $0x148] sm:$0xff] %vm746, %v633
    %789 = vst.msk [vmem:[#allocation2 + $0x150] sm:$0xff] %vm746, %v638
    %790 = vst.msk [vmem:[#allocation2 + $0x158] sm:$0xff] %vm746, %v643
    %791 = vst.msk [vmem:[#allocation2 + $0x160] sm:$0xff] %vm746, %v648
    %792 = vst.msk [vmem:[#allocation2 + $0x168] sm:$0xff] %vm746, %v653
    %793 = vst.msk [vmem:[#allocation2 + $0x170] sm:$0xff] %vm746, %v658
    %794 = vst.msk [vmem:[#allocation2 + $0x178] sm:$0xff] %vm746, %v663
    %795 = vst.msk [vmem:[#allocation2 + $0x180] sm:$0xff] %vm746, %v668
    %796 = vst.msk [vmem:[#allocation2 + $0x188] sm:$0xff] %vm746, %v673
    %797 = vst.msk [vmem:[#allocation2 + $0x190] sm:$0xff] %vm746, %v678
    %798 = vst.msk [vmem:[#allocation2 + $0x198] sm:$0xff] %vm746, %v683
    %799 = vst.msk [vmem:[#allocation2 + $0x1a0] sm:$0xff] %vm746, %v688
    %800 = vst.msk [vmem:[#allocation2 + $0x1a8] sm:$0xff] %vm746, %v693
    %801 = vst.msk [vmem:[#allocation2 + $0x1b0] sm:$0xff] %vm746, %v698
    %802 = vst.msk [vmem:[#allocation2 + $0x1b8] sm:$0xff] %vm746, %v703
    %803 = vst.msk [vmem:[#allocation2 + $0x1c0] sm:$0xff] %vm746, %v708
    %804 = vst.msk [vmem:[#allocation2 + $0x1c8] sm:$0xff] %vm746, %v713
    %805 = vst.msk [vmem:[#allocation2 + $0x1d0] sm:$0xff] %vm746, %v718
    %806 = vst.msk [vmem:[#allocation2 + $0x1d8] sm:$0xff] %vm746, %v723
    %807 = vst.msk [vmem:[#allocation2 + $0x1e0] sm:$0xff] %vm746, %v728
    %808 = vst.msk [vmem:[#allocation2 + $0x1e8] sm:$0xff] %vm746, %v733
    %809 = vst.msk [vmem:[#allocation2 + $0x1f0] sm:$0xff] %vm746, %v738
    %810 = vst.msk [vmem:[#allocation2 + $0x1f8] sm:$0xff] %vm746, %v743
    // Predicated region
    $region14: #{frame_embedder_forward.1} parent=1 // pred_check
      _
    $region15: #{frame_embedder_forward.1} parent=1 // pred_check_branch
      %812 = sbr.rel (0) target = $region17
    $region16: #{frame_embedder_forward.1} parent=1 // pred_region
      %s814 = ssub.s32 8192, 8192
      %815 = vsyncadd [#allocation3], %s814
      %s816 = sshll.u32 [#allocation2], 4
      %s817 = int_to_ptr.vmem [resolvable:$true] %s816
      %822 = dma.vmem_to_hbm [thread:$0]  %s817, 8192, %s3, [#allocation3], 128, 128, 8
    $region17: #{frame_embedder_forward.1} parent=1 // pred_fallthru
      _
    // Predicated region
    $region18: #{frame_embedder_forward.1} parent=1 // pred_check
      _
    $region19: #{frame_embedder_forward.1} parent=1 // pred_check_branch
      %824 = sbr.rel (0) target = $region21
    $region20: #{frame_embedder_forward.1} parent=1 // pred_region
      %825 = dma.done [#allocation3], 8192
    $region21: #{frame_embedder_forward.1} parent=1 // pred_fallthru
      _
    %826 = vsyncpa [#allocation3], 1

</llo_original>
